<compile_context>
chip_gen: v5e
topology: v5e:2x2
jax: 0.10.0
libtpu: 0.0.40
codegen_flags: <defaults>
</compile_context>

<pallas_src>
import math

import jax
import jax.numpy as jnp
from jax.experimental import pallas as pl
from jax.experimental.pallas import tpu as pltpu


# --------------------------------------------------------------------------- #
# Fused Pallas kernel                                                          #
# --------------------------------------------------------------------------- #
def actor_critic_kernel(state_ref, action_ref, w_ref, bc_ref, out_ref):
    f32 = jnp.float32
    S = state_ref.shape[-1]          # state_dim
    A = action_ref.shape[-1]         # action_dim

    x = state_ref[...]               # (TB, S)
    b = bc_ref[...]                  # (6, N): biases, inv_var row, const row

    # Fused actor||critic chain: one matmul + tanh per layer (block-diag weights).
    w0 = w_ref[0]                    # (N, N); only first S rows are non-zero
    h = jnp.tanh(jnp.dot(x, w0[:S, :], preferred_element_type=f32) + b[0:1, :])
    h = jnp.tanh(jnp.dot(h, w_ref[1], preferred_element_type=f32) + b[1:2, :])
    h = jnp.tanh(jnp.dot(h, w_ref[2], preferred_element_type=f32) + b[2:3, :])
    h4 = jnp.dot(h, w_ref[3], preferred_element_type=f32) + b[3:4, :]   # (TB, N)

    # lanes [0:A) -> actor mean (tanh head); lane A -> critic value (linear head)
    mean = jnp.tanh(h4[:, :A])                                          # (TB, A)
    lane_n = jax.lax.broadcasted_iota(jnp.int32, h4.shape, 1)
    val = jnp.sum(jnp.where(lane_n == A, h4, f32(0.0)),
                  axis=-1, keepdims=True)                               # (TB, 1)

    # diag-Gaussian log_prob; b[4,:A] = 1/(var+1e-4), b[5,0] = -0.5*(logdet+A*log2pi)
    diff = action_ref[...] - mean
    maha = jnp.sum(diff * diff * b[4:5, :A], axis=-1, keepdims=True)    # (TB, 1)
    logp = b[5:6, 0:1] - 0.5 * maha                                     # (TB, 1)

    lane = jax.lax.broadcasted_iota(jnp.int32, out_ref.shape, 1)
    out_ref[...] = jnp.where(lane == 0, logp,
                             jnp.where(lane == 1, val, f32(0.0)))


def actor_critic_evaluate(state, action, w_packed, bc_packed, entropy):
    """Returns (action_log_probs (B,), state_values (B,1), dist_entropy (B,))."""
    B, S = state.shape
    A = action.shape[-1]
    L, N, _ = w_packed.shape
    TB = B if B <= 512 else 512                      # batch tile (rows per grid step)

    out = pl.pallas_call(
        actor_critic_kernel,
        out_shape=jax.ShapeDtypeStruct((B, 128), jnp.float32),
        grid=(pl.cdiv(B, TB),),
        in_specs=[
            pl.BlockSpec((TB, S), lambda i: (i, 0)),          # state tile
            pl.BlockSpec((TB, A), lambda i: (i, 0)),          # action tile
            pl.BlockSpec((L, N, N), lambda i: (0, 0, 0)),     # weights (resident)
            pl.BlockSpec(bc_packed.shape, lambda i: (0, 0)),  # biases/consts (resident)
        ],
        out_specs=pl.BlockSpec((TB, 128), lambda i: (i, 0)),  # lane-dense output slab
        compiler_params=pltpu.CompilerParams(dimension_semantics=("parallel",)),
    )(state, action, w_packed, bc_packed)

    action_log_probs = out[:, 0]
    state_values = out[:, 1:2]
    dist_entropy = jnp.broadcast_to(entropy, (B,))   # constant: depends only on action_var
    return action_log_probs, state_values, dist_entropy


# --------------------------------------------------------------------------- #
# Parameter packing (actor || critic block-diagonal) + hoisted constants       #
# --------------------------------------------------------------------------- #
def pack_actor_critic(actor_p, critic_p, action_var, state_dim, hidden, action_dim):
    """actor_p/critic_p = [w1,b1,...,w4,b4] with weights in (in, out) layout."""
    aw, ab = actor_p[0::2], actor_p[1::2]
    cw, cb = critic_p[0::2], critic_p[1::2]
    N = 2 * hidden
    assert N >= action_dim + 1

    W = jnp.zeros((4, N, N), jnp.float32)
    W = W.at[0, :state_dim, :hidden].set(aw[0])
    W = W.at[0, :state_dim, hidden:].set(cw[0])
    for l in (1, 2):
        W = W.at[l, :hidden, :hidden].set(aw[l])
        W = W.at[l, hidden:, hidden:].set(cw[l])
    W = W.at[3, :hidden, :action_dim].set(aw[3])
    W = W.at[3, hidden:, action_dim:action_dim + 1].set(cw[3])

    BC = jnp.zeros((6, N), jnp.float32)
    for l in range(3):
        BC = BC.at[l, :hidden].set(ab[l][0])
        BC = BC.at[l, hidden:].set(cb[l][0])
    BC = BC.at[3, :action_dim].set(ab[3][0])
    BC = BC.at[3, action_dim].set(cb[3][0, 0])

    var = action_var.reshape(-1) + 1e-4
    log_det = jnp.sum(jnp.log(var))
    log_2pi = math.log(2.0 * math.pi)
    BC = BC.at[4, :action_dim].set(1.0 / var)
    BC = BC.at[5, 0].set(-0.5 * (log_det + action_dim * log_2pi))

    entropy = 0.5 * (action_dim * (1.0 + log_2pi) + log_det)
    return W, BC, entropy


# --------------------------------------------------------------------------- #
# Deterministic parameter init (mirrors torch.nn.init.orthogonal_ on weights)  #
# --------------------------------------------------------------------------- #
def orthogonal(key, out_dim, in_dim):
    n, m = max(out_dim, in_dim), min(out_dim, in_dim)
    a = jax.random.normal(key, (n, m), dtype=jnp.float32)
    q, r = jnp.linalg.qr(a)
    q = q * jnp.sign(jnp.diagonal(r))
    if out_dim < in_dim:
        q = q.T
    return q[:out_dim, :in_dim]          # PyTorch layout (out, in)


def make_mlp_params(key, dims):
    """Returns [w1, b1, w2, b2, ...] with weights transposed to (in, out)."""
    params = []
    for i in range(len(dims) - 1):
        key, kw, kb = jax.random.split(key, 3)
        in_d, out_d = dims[i], dims[i + 1]
        w = orthogonal(kw, out_d, in_d)                                   # (out, in)
        bound = 1.0 / math.sqrt(in_d)                                     # default bias init
        b = jax.random.uniform(kb, (1, out_d), jnp.float32, -bound, bound)
        params += [jnp.asarray(w.T), b]                                   # kernel layout (in, out)
    return params, key


# --------------------------------------------------------------------------- #
# Pure-JAX reference for correctness check                                     #
# --------------------------------------------------------------------------- #
def ref_mlp(x, params, final_tanh):
    n = len(params) // 2
    h = x
    for i in range(n):
        h = h @ params[2 * i] + params[2 * i + 1]
        if i < n - 1 or final_tanh:
            h = jnp.tanh(h)
    return h


def ref_evaluate(state, action, actor_p, critic_p, action_var):
    mean = ref_mlp(state, actor_p, final_tanh=True)
    val = ref_mlp(state, critic_p, final_tanh=False)
    var = action_var + 1e-4
    d = action.shape[-1]
    log_det = jnp.sum(jnp.log(var), axis=-1)
    maha = jnp.sum((action - mean) ** 2 / var, axis=-1)
    log_2pi = math.log(2.0 * math.pi)
    logp = -0.5 * (maha + log_det + d * log_2pi)
    ent = jnp.broadcast_to(0.5 * (d * (1.0 + log_2pi) + log_det), (state.shape[0],))
    return logp, val, ent


if __name__ == "__main__":
    B, state_dim, hidden, action_dim = 8, 16, 32, 4
    action_std_init = 0.6

    key = jax.random.PRNGKey(0)
    key, ks, ka = jax.random.split(key, 3)
    state = jax.random.normal(ks, (B, state_dim), dtype=jnp.float32)
    action = jax.random.normal(ka, (B, action_dim), dtype=jnp.float32)

    actor_params, key = make_mlp_params(key, [state_dim, hidden, hidden, hidden, action_dim])
    critic_params, key = make_mlp_params(key, [state_dim, hidden, hidden, hidden, 1])
    action_var = jnp.full((action_dim,), action_std_init * action_std_init, dtype=jnp.float32)

    W, BC, entropy = pack_actor_critic(actor_params, critic_params, action_var,
                                       state_dim, hidden, action_dim)

    logp, val, ent = actor_critic_evaluate(state, action, W, BC, entropy)
    jax.block_until_ready((logp, val, ent))

    logp_ref, val_ref, ent_ref = ref_evaluate(state, action, actor_params, critic_params,
                                              action_var[None, :])
    assert jnp.allclose(logp, logp_ref, atol=1e-4, rtol=1e-4), "log_prob mismatch"
    assert jnp.allclose(val, val_ref, atol=1e-4, rtol=1e-4), "state_value mismatch"
    assert jnp.allclose(ent, ent_ref, atol=1e-4, rtol=1e-4), "entropy mismatch"

    print("KERNEL_OK")
</pallas_src>

<mosaic_0001>
module attributes {stable_mosaic.version = 11 : i64} {
  func.func @actor_critic_kernel(%arg0: i32, %arg1: memref<8x16xf32, #tpu.memory_space<vmem>>, %arg2: memref<8x4xf32, #tpu.memory_space<vmem>>, %arg3: memref<4x64x64xf32, #tpu.memory_space<vmem>>, %arg4: memref<6x64xf32, #tpu.memory_space<vmem>>, %arg5: memref<8x128xf32, #tpu.memory_space<vmem>>) attributes {dimension_semantics = [#tpu.dimension_semantics<parallel>], iteration_bounds = array<i64: 1>, scalar_prefetch = 0 : i64, scratch_operands = 0 : i64, tpu.core_type = #tpu.core_type<tc>, window_params = [{transform_indices = @transform_0, window_bounds = array<i64: 8, 16>}, {transform_indices = @transform_1, window_bounds = array<i64: 8, 4>}, {pipeline_mode = #tpu.pipeline_mode<synchronous>, transform_indices = @transform_2, window_bounds = array<i64: 4, 64, 64>}, {pipeline_mode = #tpu.pipeline_mode<synchronous>, transform_indices = @transform_3, window_bounds = array<i64: 6, 64>}, {transform_indices = @transform_4, window_bounds = array<i64: 8, 128>}]} {
    %c0 = arith.constant 0 : index
    %c0_0 = arith.constant 0 : index
    %0 = vector.load %arg1[%c0, %c0_0] : memref<8x16xf32, #tpu.memory_space<vmem>>, vector<8x16xf32>
    %c0_1 = arith.constant 0 : index
    %c0_2 = arith.constant 0 : index
    %1 = vector.load %arg4[%c0_1, %c0_2] : memref<6x64xf32, #tpu.memory_space<vmem>>, vector<6x64xf32>
    %c0_3 = arith.constant 0 : index
    %c0_4 = arith.constant 0 : index
    %c0_5 = arith.constant 0 : index
    %2 = vector.load %arg3[%c0_3, %c0_4, %c0_5] : memref<4x64x64xf32, #tpu.memory_space<vmem>>, vector<1x64x64xf32>
    %3 = vector.shape_cast %2 : vector<1x64x64xf32> to vector<64x64xf32>
    %4 = vector.extract_strided_slice %3 {offsets = [0, 0], sizes = [16, 64], strides = [1, 1]} : vector<64x64xf32> to vector<16x64xf32>
    %cst = arith.constant dense<0.000000e+00> : vector<8x64xf32>
    %5 = tpu.matmul %0, %4, %cst {dimension_numbers = #tpu.dot_dimension_numbers<[1], [0], [0], [1], [0, 0, 1, 1], [], []>} : vector<8x16xf32>, vector<16x64xf32>, vector<8x64xf32> -> vector<8x64xf32>
    %6 = vector.extract_strided_slice %1 {offsets = [0, 0], sizes = [1, 64], strides = [1, 1]} : vector<6x64xf32> to vector<1x64xf32>
    %7 = vector.broadcast %6 : vector<1x64xf32> to vector<8x64xf32>
    %8 = arith.addf %5, %7 : vector<8x64xf32>
    %9 = math.tanh %8 : vector<8x64xf32>
    %c1 = arith.constant 1 : index
    %c0_6 = arith.constant 0 : index
    %c0_7 = arith.constant 0 : index
    %10 = vector.load %arg3[%c1, %c0_6, %c0_7] : memref<4x64x64xf32, #tpu.memory_space<vmem>>, vector<1x64x64xf32>
    %11 = vector.shape_cast %10 : vector<1x64x64xf32> to vector<64x64xf32>
    %cst_8 = arith.constant dense<0.000000e+00> : vector<8x64xf32>
    %12 = tpu.matmul %9, %11, %cst_8 {dimension_numbers = #tpu.dot_dimension_numbers<[1], [0], [0], [1], [0, 0, 1, 1], [], []>} : vector<8x64xf32>, vector<64x64xf32>, vector<8x64xf32> -> vector<8x64xf32>
    %13 = vector.extract_strided_slice %1 {offsets = [1, 0], sizes = [1, 64], strides = [1, 1]} : vector<6x64xf32> to vector<1x64xf32>
    %14 = vector.broadcast %13 : vector<1x64xf32> to vector<8x64xf32>
    %15 = arith.addf %12, %14 : vector<8x64xf32>
    %16 = math.tanh %15 : vector<8x64xf32>
    %c2 = arith.constant 2 : index
    %c0_9 = arith.constant 0 : index
    %c0_10 = arith.constant 0 : index
    %17 = vector.load %arg3[%c2, %c0_9, %c0_10] : memref<4x64x64xf32, #tpu.memory_space<vmem>>, vector<1x64x64xf32>
    %18 = vector.shape_cast %17 : vector<1x64x64xf32> to vector<64x64xf32>
    %cst_11 = arith.constant dense<0.000000e+00> : vector<8x64xf32>
    %19 = tpu.matmul %16, %18, %cst_11 {dimension_numbers = #tpu.dot_dimension_numbers<[1], [0], [0], [1], [0, 0, 1, 1], [], []>} : vector<8x64xf32>, vector<64x64xf32>, vector<8x64xf32> -> vector<8x64xf32>
    %20 = vector.extract_strided_slice %1 {offsets = [2, 0], sizes = [1, 64], strides = [1, 1]} : vector<6x64xf32> to vector<1x64xf32>
    %21 = vector.broadcast %20 : vector<1x64xf32> to vector<8x64xf32>
    %22 = arith.addf %19, %21 : vector<8x64xf32>
    %23 = math.tanh %22 : vector<8x64xf32>
    %c3 = arith.constant 3 : index
    %c0_12 = arith.constant 0 : index
    %c0_13 = arith.constant 0 : index
    %24 = vector.load %arg3[%c3, %c0_12, %c0_13] : memref<4x64x64xf32, #tpu.memory_space<vmem>>, vector<1x64x64xf32>
    %25 = vector.shape_cast %24 : vector<1x64x64xf32> to vector<64x64xf32>
    %cst_14 = arith.constant dense<0.000000e+00> : vector<8x64xf32>
    %26 = tpu.matmul %23, %25, %cst_14 {dimension_numbers = #tpu.dot_dimension_numbers<[1], [0], [0], [1], [0, 0, 1, 1], [], []>} : vector<8x64xf32>, vector<64x64xf32>, vector<8x64xf32> -> vector<8x64xf32>
    %27 = vector.extract_strided_slice %1 {offsets = [3, 0], sizes = [1, 64], strides = [1, 1]} : vector<6x64xf32> to vector<1x64xf32>
    %28 = vector.broadcast %27 : vector<1x64xf32> to vector<8x64xf32>
    %29 = arith.addf %26, %28 : vector<8x64xf32>
    %30 = vector.extract_strided_slice %29 {offsets = [0, 0], sizes = [8, 4], strides = [1, 1]} : vector<8x64xf32> to vector<8x4xf32>
    %31 = math.tanh %30 : vector<8x4xf32>
    %32 = tpu.iota {dimensions = array<i32: 1>} : vector<8x64xi32>
    %c4_i32 = arith.constant 4 : i32
    %33 = vector.broadcast %c4_i32 : i32 to vector<8x64xi32>
    %34 = arith.cmpi eq, %32, %33 : vector<8x64xi32>
    %cst_15 = arith.constant 0.000000e+00 : f32
    %35 = vector.broadcast %cst_15 : f32 to vector<8x64xf32>
    %36 = arith.select %34, %29, %35 : vector<8x64xi1>, vector<8x64xf32>
    %cst_16 = arith.constant dense<0.000000e+00> : vector<8xf32>
    %37 = vector.multi_reduction <add>, %36, %cst_16 [1] : vector<8x64xf32> to vector<8xf32>
    %38 = vector.shape_cast %37 : vector<8xf32> to vector<8x1xf32>
    %c0_17 = arith.constant 0 : index
    %c0_18 = arith.constant 0 : index
    %39 = vector.load %arg2[%c0_17, %c0_18] : memref<8x4xf32, #tpu.memory_space<vmem>>, vector<8x4xf32>
    %40 = arith.subf %39, %31 : vector<8x4xf32>
    %41 = arith.mulf %40, %40 : vector<8x4xf32>
    %42 = vector.extract_strided_slice %1 {offsets = [4, 0], sizes = [1, 4], strides = [1, 1]} : vector<6x64xf32> to vector<1x4xf32>
    %43 = vector.broadcast %42 : vector<1x4xf32> to vector<8x4xf32>
    %44 = arith.mulf %41, %43 : vector<8x4xf32>
    %cst_19 = arith.constant dense<0.000000e+00> : vector<8xf32>
    %45 = vector.multi_reduction <add>, %44, %cst_19 [1] : vector<8x4xf32> to vector<8xf32>
    %46 = vector.shape_cast %45 : vector<8xf32> to vector<8x1xf32>
    %47 = vector.extract_strided_slice %1 {offsets = [5, 0], sizes = [1, 1], strides = [1, 1]} : vector<6x64xf32> to vector<1x1xf32>
    %cst_20 = arith.constant 5.000000e-01 : f32
    %48 = vector.broadcast %cst_20 : f32 to vector<8x1xf32>
    %49 = arith.mulf %48, %46 : vector<8x1xf32>
    %50 = vector.broadcast %47 : vector<1x1xf32> to vector<8x1xf32>
    %51 = arith.subf %50, %49 : vector<8x1xf32>
    %52 = tpu.iota {dimensions = array<i32: 1>} : vector<8x128xi32>
    %c0_i32 = arith.constant 0 : i32
    %53 = vector.broadcast %c0_i32 : i32 to vector<8x128xi32>
    %54 = arith.cmpi eq, %52, %53 : vector<8x128xi32>
    %c1_i32 = arith.constant 1 : i32
    %55 = vector.broadcast %c1_i32 : i32 to vector<8x128xi32>
    %56 = arith.cmpi eq, %52, %55 : vector<8x128xi32>
    %cst_21 = arith.constant 0.000000e+00 : f32
    %57 = vector.shape_cast %38 : vector<8x1xf32> to vector<8x1xf32>
    %58 = vector.broadcast %57 : vector<8x1xf32> to vector<8x128xf32>
    %59 = vector.broadcast %cst_21 : f32 to vector<8x128xf32>
    %60 = arith.select %56, %58, %59 : vector<8x128xi1>, vector<8x128xf32>
    %61 = vector.shape_cast %51 : vector<8x1xf32> to vector<8x1xf32>
    %62 = vector.broadcast %61 : vector<8x1xf32> to vector<8x128xf32>
    %63 = arith.select %54, %62, %60 : vector<8x128xi1>, vector<8x128xf32>
    %c0_22 = arith.constant 0 : index
    %c0_23 = arith.constant 0 : index
    %64 = vector.load %arg5[%c0_22, %c0_23] : memref<8x128xf32, #tpu.memory_space<vmem>>, vector<8x128xf32>
    tpu.vector_store %arg5[%c0_22, %c0_23], %63 {strides = array<i32>} : memref<8x128xf32, #tpu.memory_space<vmem>>, vector<8x128xf32>,
    return
  }
  func.func @transform_0(%arg0: i32) -> (i32, i32) {
    %c0_i32 = arith.constant 0 : i32
    %c0_i32_0 = arith.constant 0 : i32
    return %arg0, %c0_i32 : i32, i32
  }
  func.func @transform_1(%arg0: i32) -> (i32, i32) {
    %c0_i32 = arith.constant 0 : i32
    %c0_i32_0 = arith.constant 0 : i32
    return %arg0, %c0_i32 : i32, i32
  }
  func.func @transform_2(%arg0: i32) -> (i32, i32, i32) {
    %c0_i32 = arith.constant 0 : i32
    %c0_i32_0 = arith.constant 0 : i32
    %c0_i32_1 = arith.constant 0 : i32
    %c0_i32_2 = arith.constant 0 : i32
    return %c0_i32, %c0_i32_0, %c0_i32_1 : i32, i32, i32
  }
  func.func @transform_3(%arg0: i32) -> (i32, i32) {
    %c0_i32 = arith.constant 0 : i32
    %c0_i32_0 = arith.constant 0 : i32
    %c0_i32_1 = arith.constant 0 : i32
    return %c0_i32, %c0_i32_0 : i32, i32
  }
  func.func @transform_4(%arg0: i32) -> (i32, i32) {
    %c0_i32 = arith.constant 0 : i32
    %c0_i32_0 = arith.constant 0 : i32
    return %arg0, %c0_i32 : i32, i32
  }
}

</mosaic_0001>

<llo_original>
// kernel: tpu_custom_call.1
$region0: #{tpu_custom_call.1}
  #allocation0 [shape = 'u32[]', space=smem, size = 0x4, offset = 0x4, fixed_abs, tag = 'smem constant byte address 0x4 - core index']
  #allocation1 [shape = 'u32[72,128]{1,0:T(1,128)}', space=vmem, size = 0x9000, scoped, tag = 'internal scratch']
  %s0 = inlined_call_operand.vmem [shape: f32[8,16], index: 0, kind: input, shape index: {}]
  %s1 = inlined_call_operand.vmem [shape: f32[8,4], index: 1, kind: input, shape index: {}]
  %s2 = inlined_call_operand.hbm [shape: f32[4,64,64], index: 2, kind: input, shape index: {}]
  %s3 = inlined_call_operand.hbm [shape: f32[6,64], index: 3, kind: input, shape index: {}]
  %s4 = inlined_call_operand.hbm [shape: f32[8,128], index: 4, kind: output, shape index: {}]
  %s5 = sld [smem:[#allocation0]]
  $region34: #{tpu_custom_call.1} parent=0
    _
  %s7 = ssub.s32 1, %s5
  %s8 = scalar_select 0, %s7, %s5
  $region1: #{tpu_custom_call.1} parent=0
    #allocation2 [shape = 'u8[131072]{0}', space=vmem, size = 0x20000, scoped, tag = 'input window, operand 2, single buffered']
    #allocation3 [shape = 's32[1]{0}', space=sflag, size = 0x4, scoped, tag = 'scoped memory for tpu_custom_call.1']
    #allocation4 [shape = 's32[1]{0}', space=sflag, size = 0x4, scoped, tag = 'scoped memory for tpu_custom_call.1']
    #allocation5 [shape = 'u8[4096]{0}', space=vmem, size = 0x1000, scoped, tag = 'input window, operand 3, single buffered']
    #allocation6 [shape = 's32[1]{0}', space=sflag, size = 0x4, scoped, tag = 'scoped memory for tpu_custom_call.1']
    #allocation7 [shape = 'u8[4096]{0}', space=vmem, size = 0x1000, scoped, tag = 'output window, operand 0, single buffered']
    %9 = vsyncpa [#allocation3], 0
    %10 = vsyncpa [#allocation6], 0
    %11 = vsyncpa [#allocation4], 0
    // Predicated region
    $region2: #{tpu_custom_call.1} parent=1 // pred_check
      _
    $region3: #{tpu_custom_call.1} parent=1 // pred_check_branch
      %13 = sbr.rel (0) target = $region5
    $region4: #{tpu_custom_call.1} parent=1 // pred_region
      _
    $region5: #{tpu_custom_call.1} parent=1 // pred_fallthru
      _
    // Predicated region
    $region6: #{tpu_custom_call.1} parent=1 // pred_check
      _
    $region7: #{tpu_custom_call.1} parent=1 // pred_check_branch
      %15 = sbr.rel (0) target = $region9
    $region8: #{tpu_custom_call.1} parent=1 // pred_region
      _
    $region9: #{tpu_custom_call.1} parent=1 // pred_fallthru
      _
    // Predicated region
    $region10: #{tpu_custom_call.1} parent=1 // pred_check
      _
    $region11: #{tpu_custom_call.1} parent=1 // pred_check_branch
      %17 = sbr.rel (0) target = $region13
    $region12: #{tpu_custom_call.1} parent=1 // pred_region
      %19 = vsyncadd [#allocation3], 0
      %s20 = sshll.u32 %s2, 4
      %s21 = int_to_ptr.hbm [resolvable:$true] %s20
      %s22 = sshll.u32 [#allocation2], 4
      %s23 = int_to_ptr.vmem [resolvable:$true] %s22
      %28 = dma.hbm_to_vmem [thread:$0]  %s21, 4096, %s23, [#allocation3], 128, 128, 8
    $region13: #{tpu_custom_call.1} parent=1 // pred_fallthru
      _
    // Predicated region
    $region14: #{tpu_custom_call.1} parent=1 // pred_check
      _
    $region15: #{tpu_custom_call.1} parent=1 // pred_check_branch
      %30 = sbr.rel (0) target = $region17
    $region16: #{tpu_custom_call.1} parent=1 // pred_region
      %32 = vsyncadd [#allocation6], 0
      %s34 = sshll.u32 %s3, 4
      %s35 = int_to_ptr.hbm [resolvable:$true] %s34
      %s36 = sshll.u32 [#allocation5], 4
      %s37 = int_to_ptr.vmem [resolvable:$true] %s36
      %39 = dma.hbm_to_vmem [thread:$0]  %s35, 128, %s37, [#allocation6]
    $region17: #{tpu_custom_call.1} parent=1 // pred_fallthru
      _
    // Predicated region
    $region18: #{tpu_custom_call.1} parent=1 // pred_check
      _
    $region19: #{tpu_custom_call.1} parent=1 // pred_check_branch
      %41 = sbr.rel (0) target = $region21
    $region20: #{tpu_custom_call.1} parent=1 // pred_region
      %43 = dma.done [#allocation3], 4096
    $region21: #{tpu_custom_call.1} parent=1 // pred_fallthru
      _
    // Predicated region
    $region22: #{tpu_custom_call.1} parent=1 // pred_check
      _
    $region23: #{tpu_custom_call.1} parent=1 // pred_check_branch
      %45 = sbr.rel (0) target = $region25
    $region24: #{tpu_custom_call.1} parent=1 // pred_region
      %47 = dma.done [#allocation6], 128
    $region25: #{tpu_custom_call.1} parent=1 // pred_fallthru
      _
    %v48 = vld [vmem:[%s0] sm:$0xff]
    %v49 = vld [vmem:[#allocation5] sm:$0x3f]
    %v50 = vld [vmem:[#allocation2] sm:$0xff]
    %v51 = vld [vmem:[#allocation2 + $0x8] sm:$0xff]
    %v52 = vperm.slane %v49, 0
    %vm53 = vcmask 130048
    %v55 = vsel %vm53, %v48, 0
    %57 = vmatpush.msra.mxu0 0.0
    %58 = vmatpush.msra.mxu0 0.0
    %59 = vmatpush.msra.mxu0 0.0
    %60 = vmatpush.msra.mxu0 0.0
    %61 = vmatpush.msra.mxu0 0.0
    %62 = vmatpush.msra.mxu0 0.0
    %63 = vmatpush.msra.mxu0 0.0
    %64 = vmatpush.msra.mxu0 0.0
    %65 = vmatpush.msra.mxu0 0.0
    %66 = vmatpush.msra.mxu0 0.0
    %67 = vmatpush.msra.mxu0 0.0
    %68 = vmatpush.msra.mxu0 0.0
    %69 = vmatpush.msra.mxu0 0.0
    %70 = vmatpush.msra.mxu0 0.0
    %71 = vmatpush.msra.mxu0 %v51
    %72 = vmatpush.msra.mxu0 %v50
    %73 = vmatmul.f32.gmra.mxu0 %v55
    %v74 = vpop.f32.mrf.mxu0
    %v75 = vadd.f32 %v52, %v74
    %76 = vdwg.mxu0
    %v77 = vtanh.pop %v75
    %s78 = scalar_lea.vmem [#allocation2], 64
    %v79 = vld [vmem:[%s78] sm:$0xff]
    %v80 = vld [vmem:[%s78 + $0x8] sm:$0xff]
    %v81 = vld [vmem:[%s78 + $0x10] sm:$0xff]
    %v82 = vld [vmem:[%s78 + $0x18] sm:$0xff]
    %v83 = vld [vmem:[%s78 + $0x20] sm:$0xff]
    %v84 = vld [vmem:[%s78 + $0x28] sm:$0xff]
    %v85 = vld [vmem:[%s78 + $0x30] sm:$0xff]
    %v86 = vld [vmem:[%s78 + $0x38] sm:$0xff]
    %v87 = vperm.slane %v49, 1
    %vm88 = vcmask 523264
    %v90 = vsel %vm88, %v77, 0
    %92 = vmatpush.msra.mxu0 0.0
    %93 = vmatpush.msra.mxu0 0.0
    %94 = vmatpush.msra.mxu0 0.0
    %95 = vmatpush.msra.mxu0 0.0
    %96 = vmatpush.msra.mxu0 0.0
    %97 = vmatpush.msra.mxu0 0.0
    %98 = vmatpush.msra.mxu0 0.0
    %99 = vmatpush.msra.mxu0 0.0
    %100 = vmatpush.msra.mxu0 %v86
    %101 = vmatpush.msra.mxu0 %v85
    %102 = vmatpush.msra.mxu0 %v84
    %103 = vmatpush.msra.mxu0 %v83
    %104 = vmatpush.msra.mxu0 %v82
    %105 = vmatpush.msra.mxu0 %v81
    %106 = vmatpush.msra.mxu0 %v80
    %107 = vmatpush.msra.mxu0 %v79
    %108 = vmatmul.f32.gmra.mxu0 %v90
    %v109 = vpop.f32.mrf.mxu0
    %v110 = vadd.f32 %v87, %v109
    %111 = vdwg.mxu0
    %v112 = vtanh.pop %v110
    %s113 = scalar_lea.vmem [#allocation2], 128
    %v114 = vld [vmem:[%s113] sm:$0xff]
    %v115 = vld [vmem:[%s113 + $0x8] sm:$0xff]
    %v116 = vld [vmem:[%s113 + $0x10] sm:$0xff]
    %v117 = vld [vmem:[%s113 + $0x18] sm:$0xff]
    %v118 = vld [vmem:[%s113 + $0x20] sm:$0xff]
    %v119 = vld [vmem:[%s113 + $0x28] sm:$0xff]
    %v120 = vld [vmem:[%s113 + $0x30] sm:$0xff]
    %v121 = vld [vmem:[%s113 + $0x38] sm:$0xff]
    %v122 = vperm.slane %v49, 2
    %v124 = vsel %vm88, %v112, 0
    %126 = vmatpush.msra.mxu0 0.0
    %127 = vmatpush.msra.mxu0 0.0
    %128 = vmatpush.msra.mxu0 0.0
    %129 = vmatpush.msra.mxu0 0.0
    %130 = vmatpush.msra.mxu0 0.0
    %131 = vmatpush.msra.mxu0 0.0
    %132 = vmatpush.msra.mxu0 0.0
    %133 = vmatpush.msra.mxu0 0.0
    %134 = vmatpush.msra.mxu0 %v121
    %135 = vmatpush.msra.mxu0 %v120
    %136 = vmatpush.msra.mxu0 %v119
    %137 = vmatpush.msra.mxu0 %v118
    %138 = vmatpush.msra.mxu0 %v117
    %139 = vmatpush.msra.mxu0 %v116
    %140 = vmatpush.msra.mxu0 %v115
    %141 = vmatpush.msra.mxu0 %v114
    %142 = vmatmul.f32.gmra.mxu0 %v124
    %v143 = vpop.f32.mrf.mxu0
    %v144 = vadd.f32 %v122, %v143
    %145 = vdwg.mxu0
    %v146 = vtanh.pop %v144
    %s147 = scalar_lea.vmem [#allocation2], 192
    %v148 = vld [vmem:[%s147] sm:$0xff]
    %v149 = vld [vmem:[%s147 + $0x8] sm:$0xff]
    %v150 = vld [vmem:[%s147 + $0x10] sm:$0xff]
    %v151 = vld [vmem:[%s147 + $0x18] sm:$0xff]
    %v152 = vld [vmem:[%s147 + $0x20] sm:$0xff]
    %v153 = vld [vmem:[%s147 + $0x28] sm:$0xff]
    %v154 = vld [vmem:[%s147 + $0x30] sm:$0xff]
    %v155 = vld [vmem:[%s147 + $0x38] sm:$0xff]
    %v156 = vperm.slane %v49, 3
    %v158 = vsel %vm88, %v146, 0
    %160 = vmatpush.msra.mxu0 0.0
    %161 = vmatpush.msra.mxu0 0.0
    %162 = vmatpush.msra.mxu0 0.0
    %163 = vmatpush.msra.mxu0 0.0
    %164 = vmatpush.msra.mxu0 0.0
    %165 = vmatpush.msra.mxu0 0.0
    %166 = vmatpush.msra.mxu0 0.0
    %167 = vmatpush.msra.mxu0 0.0
    %168 = vmatpush.msra.mxu0 %v155
    %169 = vmatpush.msra.mxu0 %v154
    %170 = vmatpush.msra.mxu0 %v153
    %171 = vmatpush.msra.mxu0 %v152
    %172 = vmatpush.msra.mxu0 %v151
    %173 = vmatpush.msra.mxu0 %v150
    %174 = vmatpush.msra.mxu0 %v149
    %175 = vmatpush.msra.mxu0 %v148
    %176 = vmatmul.f32.gmra.mxu0 %v158
    %v177 = vpop.f32.mrf.mxu0
    %v178 = vadd.f32 %v156, %v177
    %179 = vdwg.mxu0
    %v180 = vtanh.pop %v178
    %v181 = vlaneseq
    %v182 = vand.u32 %v181, 127
    %vm183 = vcmp.eq.s32.totalorder %v182, 4
    %v184 = vsel %vm183, %v178, 0.0
    %v185 = vsel %vm88, %v184, 0.0
    %186 = vadd.xlane.f32.xlu0 %v185
    %v187 = vpop.xlane.xlu0 %186
    %v188 = vld [vmem:[%s1] sm:$0xff]
    %v189 = vsub.f32 %v188, %v180
    %v190 = vmul.f32 %v189, %v189
    %v191 = vperm.slane %v49, 4
    %v192 = vmul.f32 %v190, %v191
    %vm193 = vcmask 31744
    %v194 = vsel %vm193, %v192, 0.0
    %195 = vadd.xlane.f32.xlu0 %v194
    %v196 = vpop.xlane.xlu0 %195
    %v197 = vmul.f32 %v196, 0.5
    %v198 = vperm.slane %v49, 5
    %v199 = vsub.f32 %v198, %v197
    %vm200 = vcmp.eq.s32.totalorder %v182, 0
    %vm201 = vcmp.eq.s32.totalorder %v182, 1
    %v202 = vsel %vm201, %v187, 0.0
    %204 = vset.pattern.permute.xlu0 0
    %205 = vperm.xlu0 %204, %v199
    %v206 = vpop.permute.xlu0 %205
    %v208 = vsel %vm200, %v206, %v202
    %209 = vst [vmem:[#allocation7] sm:$0xff] %v208
    // Predicated region
    $region26: #{tpu_custom_call.1} parent=1 // pred_check
      _
    $region27: #{tpu_custom_call.1} parent=1 // pred_check_branch
      %211 = sbr.rel (0) target = $region29
    $region28: #{tpu_custom_call.1} parent=1 // pred_region
      %213 = vsyncadd [#allocation4], 0
      %s215 = sshll.u32 [#allocation7], 4
      %s216 = int_to_ptr.vmem [resolvable:$true] %s215
      %s217 = sshll.u32 %s4, 4
      %s218 = int_to_ptr.hbm [resolvable:$true] %s217
      %220 = dma.vmem_to_hbm [thread:$0]  %s216, 128, %s218, [#allocation4]
    $region29: #{tpu_custom_call.1} parent=1 // pred_fallthru
      _
    // Predicated region
    $region30: #{tpu_custom_call.1} parent=1 // pred_check
      _
    $region31: #{tpu_custom_call.1} parent=1 // pred_check_branch
      %222 = sbr.rel (0) target = $region33
    $region32: #{tpu_custom_call.1} parent=1 // pred_region
      %224 = dma.done [#allocation4], 128
    $region33: #{tpu_custom_call.1} parent=1 // pred_fallthru
      _
    %225 = vsyncpa [#allocation3], 1
    %226 = vsyncpa [#allocation6], 1
    %227 = vsyncpa [#allocation4], 1

</llo_original>
